<compile_context>
chip_gen: v6e
topology: v6e:2x2x1
jax: 0.10.0
libtpu: 0.0.40
codegen_flags: <defaults>
</compile_context>

<pallas_src>
import jax
import jax.numpy as jnp
import numpy as np
from jax.experimental import pallas as pl
from jax.experimental.pallas import tpu as pltpu


def _round_up(x, m):
    return ((x + m - 1) // m) * m


def make_eeg_kernel(M):
    """Build the kernel for a block of M = BT * Lpad activation rows."""

    def kernel(x_ref, mask_ref, pool_ref, w1_ref, t1_ref, w2_ref, t2_ref,
               wfc_ref, bfc_ref, out_ref):
        # conv1 + BN1 (folded) + ReLU. Taps pre-fused along K by the wrapper
        # im2col, so this is a single (M, 3C) @ (3C, H) matmul.
        h = jnp.dot(x_ref[...], w1_ref[...],
                    preferred_element_type=jnp.float32) + t1_ref[...]
        h = jnp.maximum(h, 0.0) * mask_ref[...]            # zero the pad rows

        # conv2 + BN2 (folded) + ReLU: three aligned tap matmuls on the full
        # slab, combined with sublane rolls (XLU). Roll wrap-around only
        # touches pad rows, which the pooling matrix zeroes.
        hc = h.astype(w2_ref.dtype)
        z0 = jnp.dot(hc, w2_ref[0], preferred_element_type=jnp.float32)
        z1 = jnp.dot(hc, w2_ref[1], preferred_element_type=jnp.float32)
        z2 = jnp.dot(hc, w2_ref[2], preferred_element_type=jnp.float32)
        h2 = (pltpu.roll(z0, 1, axis=0) + z1
              + pltpu.roll(z2, M - 1, axis=0) + t2_ref[...])
        h2 = jnp.maximum(h2, 0.0)                          # (M, H)

        # AdaptiveAvgPool1d(1): one (BT, M) @ (M, H) matmul; the constant
        # pooling matrix carries both the valid-row mask and the 1/L mean.
        pooled = jnp.dot(pool_ref[...], h2,
                         preferred_element_type=jnp.float32)      # (BT, H)
        # Linear(H, 2) for the whole block, single (BT, 2) store.
        out_ref[...] = (jnp.dot(pooled, wfc_ref[...],
                                preferred_element_type=jnp.float32)
                        + bfc_ref[...])

    return kernel


def eeg_classifier_forward(x_ncw, raw, *, eps=1e-5,
                           compute_dtype=jnp.float32, rows_per_step=256):
    """Forward pass matching EEGClassifier (eval-mode BatchNorm)."""
    B, C, L = x_ncw.shape
    H = raw["conv1_w"].shape[0]

    # ---- fold eval-mode BatchNorm into conv weights / biases ---------------
    s1 = raw["bn1_g"] / jnp.sqrt(raw["bn1_v"] + eps)
    t1 = ((raw["conv1_b"] - raw["bn1_m"]) * s1
          + raw["bn1_b"]).reshape(1, H).astype(jnp.float32)
    s2 = raw["bn2_g"] / jnp.sqrt(raw["bn2_v"] + eps)
    t2 = ((raw["conv2_b"] - raw["bn2_m"]) * s2
          + raw["bn2_b"]).reshape(1, H).astype(jnp.float32)

    # conv1 taps fused along K: (3C, H), row index = tap*C + cin.
    w1cat = (jnp.transpose(raw["conv1_w"], (2, 1, 0)).reshape(3 * C, H)
             * s1[None, :]).astype(compute_dtype)
    # conv2 taps: (3, H_in, H_out) with BN scale folded into the output dim.
    w2f = (jnp.transpose(raw["conv2_w"], (2, 1, 0))
           * s2[None, None, :]).astype(compute_dtype)
    wfc_t = raw["fc_w"].T.astype(jnp.float32)              # (H, 2)
    bfc = raw["fc_b"].reshape(1, 2).astype(jnp.float32)

    # ---- batched, sublane-aligned activation layout ------------------------
    Lpad = max(8, _round_up(L + 2, 8))                     # rows per sample
    BT = max(1, min(B, rows_per_step // Lpad))             # samples per step
    if BT < B:
        BT = max(8, (BT // 8) * 8)                         # keep (BT,2) blocks 8-row aligned
    B_pad = _round_up(B, BT)
    M_blk = BT * Lpad
    num_blocks = B_pad // BT

    # Wrapper-side im2col for conv1 (aligned, done once in XLA): row p holds
    # [x[p-1], x[p], x[p+1]] with zero padding at the sequence ends.
    x_blc = jnp.transpose(x_ncw, (0, 2, 1))                # (B, L, C)
    x_prev = jnp.pad(x_blc[:, :-1, :], ((0, 0), (1, 0), (0, 0)))
    x_next = jnp.pad(x_blc[:, 1:, :], ((0, 0), (0, 1), (0, 0)))
    xm = jnp.concatenate([x_prev, x_blc, x_next], axis=-1)  # (B, L, 3C)
    xm = jnp.pad(xm, ((0, B_pad - B), (1, Lpad - L - 1), (0, 0)))
    x_flat = xm.reshape(B_pad * Lpad, 3 * C).astype(compute_dtype)

    # Constant valid-row mask (1 at rows 1..L of each sample, 0 at pad rows).
    pos = np.arange(M_blk) % Lpad
    valid = (pos >= 1) & (pos <= L)
    mask = jnp.asarray(valid.astype(np.float32).reshape(M_blk, 1))

    # Constant pooling matrix: mean over the L valid rows of each sample.
    pool_np = np.zeros((BT, M_blk), np.float32)
    for b in range(BT):
        pool_np[b, b * Lpad + 1:b * Lpad + 1 + L] = 1.0 / L
    pool = jnp.asarray(pool_np)

    kernel = make_eeg_kernel(M_blk)

    def const_spec(shape):
        n = len(shape)
        return pl.BlockSpec(shape, lambda i, _n=n: (0,) * _n)

    grid_spec = pltpu.PrefetchScalarGridSpec(
        num_scalar_prefetch=0,
        grid=(num_blocks,),
        in_specs=[
            pl.BlockSpec((M_blk, 3 * C), lambda i: (i, 0)),   # im2col'd input
            const_spec((M_blk, 1)),                           # pad-row mask
            const_spec((BT, M_blk)),                          # pooling matrix
            const_spec((3 * C, H)),                           # fused conv1 w
            const_spec((1, H)),                               # folded bias 1
            const_spec((3, H, H)),                            # conv2 taps
            const_spec((1, H)),                               # folded bias 2
            const_spec((H, 2)),                               # fc weight^T
            const_spec((1, 2)),                               # fc bias
        ],
        out_specs=pl.BlockSpec((BT, 2), lambda i: (i, 0)),
    )

    out = pl.pallas_call(
        kernel,
        out_shape=jax.ShapeDtypeStruct((B_pad, 2), jnp.float32),
        grid_spec=grid_spec,
        compiler_params=pltpu.CompilerParams(
            dimension_semantics=("parallel",)),
    )(x_flat, mask, pool, w1cat, t1, w2f, t2, wfc_t, bfc)
    return out[:B]


def init_raw_params(key, C, H):
    ks = jax.random.split(key, 14)
    return {
        "conv1_w": 0.1 * jax.random.normal(ks[0], (H, C, 3), jnp.float32),
        "conv1_b": 0.1 * jax.random.normal(ks[1], (H,), jnp.float32),
        "bn1_g": 1.0 + 0.1 * jax.random.normal(ks[2], (H,), jnp.float32),
        "bn1_b": 0.1 * jax.random.normal(ks[3], (H,), jnp.float32),
        "bn1_m": 0.1 * jax.random.normal(ks[4], (H,), jnp.float32),
        "bn1_v": 0.5 + jnp.abs(jax.random.normal(ks[5], (H,), jnp.float32)),
        "conv2_w": 0.1 * jax.random.normal(ks[6], (H, H, 3), jnp.float32),
        "conv2_b": 0.1 * jax.random.normal(ks[7], (H,), jnp.float32),
        "bn2_g": 1.0 + 0.1 * jax.random.normal(ks[8], (H,), jnp.float32),
        "bn2_b": 0.1 * jax.random.normal(ks[9], (H,), jnp.float32),
        "bn2_m": 0.1 * jax.random.normal(ks[10], (H,), jnp.float32),
        "bn2_v": 0.5 + jnp.abs(jax.random.normal(ks[11], (H,), jnp.float32)),
        "fc_w": 0.1 * jax.random.normal(ks[12], (2, H), jnp.float32),
        "fc_b": 0.1 * jax.random.normal(ks[13], (2,), jnp.float32),
    }


def ref_forward(x_ncw, raw, eps=1e-5):
    # Pure-JAX reference in PyTorch NCW layout (eval-mode BatchNorm).
    def conv1d(x, w, b):
        L = x.shape[2]
        xp = jnp.pad(x, ((0, 0), (0, 0), (1, 1)))
        y = sum(jnp.einsum("oc,bcl->bol", w[:, :, k], xp[:, :, k:k + L])
                for k in range(3))
        return y + b[None, :, None]

    def bn(x, g, bt, m, v):
        return ((x - m[None, :, None]) / jnp.sqrt(v[None, :, None] + eps)
                * g[None, :, None] + bt[None, :, None])

    h = jax.nn.relu(bn(conv1d(x_ncw, raw["conv1_w"], raw["conv1_b"]),
                       raw["bn1_g"], raw["bn1_b"], raw["bn1_m"], raw["bn1_v"]))
    h = jax.nn.relu(bn(conv1d(h, raw["conv2_w"], raw["conv2_b"]),
                       raw["bn2_g"], raw["bn2_b"], raw["bn2_m"], raw["bn2_v"]))
    pooled = jnp.mean(h, axis=2)                           # (B, H)
    return pooled @ raw["fc_w"].T + raw["fc_b"]


if __name__ == "__main__":
    B, C, L, H = 2, 4, 16, 32
    key = jax.random.PRNGKey(0)
    k_x, k_p = jax.random.split(key)
    x = jax.random.normal(k_x, (B, C, L), jnp.float32)     # PyTorch NCW input

    raw = init_raw_params(k_p, C, H)

    # TODO(synk): training-mode BatchNorm (batch statistics) is not computed
    # in-kernel; the kernel implements the eval-mode (running-stats) forward.
    out = jax.block_until_ready(eeg_classifier_forward(x, raw))
    ref = jax.block_until_ready(ref_forward(x, raw))

    np.testing.assert_allclose(np.asarray(out), np.asarray(ref),
                               rtol=1e-4, atol=1e-4)
    assert out.shape == (B, 2)
    print("KERNEL_OK")
</pallas_src>

<mosaic_0001>
module attributes {stable_mosaic.version = 11 : i64} {
  func.func @kernel(%arg0: i32, %arg1: memref<48x12xf32, #tpu.memory_space<vmem>>, %arg2: memref<48x1xf32, #tpu.memory_space<vmem>>, %arg3: memref<2x48xf32, #tpu.memory_space<vmem>>, %arg4: memref<12x32xf32, #tpu.memory_space<vmem>>, %arg5: memref<1x32xf32, #tpu.memory_space<vmem>>, %arg6: memref<3x32x32xf32, #tpu.memory_space<vmem>>, %arg7: memref<1x32xf32, #tpu.memory_space<vmem>>, %arg8: memref<32x2xf32, #tpu.memory_space<vmem>>, %arg9: memref<1x2xf32, #tpu.memory_space<vmem>>, %arg10: memref<2x2xf32, #tpu.memory_space<vmem>>) attributes {dimension_semantics = [#tpu.dimension_semantics<parallel>], iteration_bounds = array<i64: 1>, scalar_prefetch = 0 : i64, scratch_operands = 0 : i64, tpu.core_type = #tpu.core_type<tc>, window_params = [{transform_indices = @transform_0, window_bounds = array<i64: 48, 12>}, {pipeline_mode = #tpu.pipeline_mode<synchronous>, transform_indices = @transform_1, window_bounds = array<i64: 48, 1>}, {pipeline_mode = #tpu.pipeline_mode<synchronous>, transform_indices = @transform_2, window_bounds = array<i64: 2, 48>}, {pipeline_mode = #tpu.pipeline_mode<synchronous>, transform_indices = @transform_3, window_bounds = array<i64: 12, 32>}, {pipeline_mode = #tpu.pipeline_mode<synchronous>, transform_indices = @transform_4, window_bounds = array<i64: 1, 32>}, {pipeline_mode = #tpu.pipeline_mode<synchronous>, transform_indices = @transform_5, window_bounds = array<i64: 3, 32, 32>}, {pipeline_mode = #tpu.pipeline_mode<synchronous>, transform_indices = @transform_6, window_bounds = array<i64: 1, 32>}, {pipeline_mode = #tpu.pipeline_mode<synchronous>, transform_indices = @transform_7, window_bounds = array<i64: 32, 2>}, {pipeline_mode = #tpu.pipeline_mode<synchronous>, transform_indices = @transform_8, window_bounds = array<i64: 1, 2>}, {transform_indices = @transform_9, window_bounds = array<i64: 2, 2>}]} {
    %c0 = arith.constant 0 : index
    %c0_0 = arith.constant 0 : index
    %0 = vector.load %arg1[%c0, %c0_0] : memref<48x12xf32, #tpu.memory_space<vmem>>, vector<48x12xf32>
    %c0_1 = arith.constant 0 : index
    %c0_2 = arith.constant 0 : index
    %1 = vector.load %arg4[%c0_1, %c0_2] : memref<12x32xf32, #tpu.memory_space<vmem>>, vector<12x32xf32>
    %cst = arith.constant dense<0.000000e+00> : vector<48x32xf32>
    %2 = tpu.matmul %0, %1, %cst {dimension_numbers = #tpu.dot_dimension_numbers<[1], [0], [0], [1], [0, 0, 1, 1], [], []>} : vector<48x12xf32>, vector<12x32xf32>, vector<48x32xf32> -> vector<48x32xf32>
    %c0_3 = arith.constant 0 : index
    %c0_4 = arith.constant 0 : index
    %3 = vector.load %arg5[%c0_3, %c0_4] : memref<1x32xf32, #tpu.memory_space<vmem>>, vector<1x32xf32>
    %4 = vector.broadcast %3 : vector<1x32xf32> to vector<48x32xf32>
    %5 = arith.addf %2, %4 : vector<48x32xf32>
    %cst_5 = arith.constant 0.000000e+00 : f32
    %6 = vector.broadcast %cst_5 : f32 to vector<48x32xf32>
    %7 = arith.maximumf %5, %6 : vector<48x32xf32>
    %c0_6 = arith.constant 0 : index
    %c0_7 = arith.constant 0 : index
    %8 = vector.load %arg2[%c0_6, %c0_7] : memref<48x1xf32, #tpu.memory_space<vmem>>, vector<48x1xf32>
    %9 = vector.broadcast %8 : vector<48x1xf32> to vector<48x32xf32>
    %10 = arith.mulf %7, %9 : vector<48x32xf32>
    %c0_8 = arith.constant 0 : index
    %c0_9 = arith.constant 0 : index
    %c0_10 = arith.constant 0 : index
    %11 = vector.load %arg6[%c0_8, %c0_9, %c0_10] : memref<3x32x32xf32, #tpu.memory_space<vmem>>, vector<1x32x32xf32>
    %12 = vector.shape_cast %11 : vector<1x32x32xf32> to vector<32x32xf32>
    %cst_11 = arith.constant dense<0.000000e+00> : vector<48x32xf32>
    %13 = tpu.matmul %10, %12, %cst_11 {dimension_numbers = #tpu.dot_dimension_numbers<[1], [0], [0], [1], [0, 0, 1, 1], [], []>} : vector<48x32xf32>, vector<32x32xf32>, vector<48x32xf32> -> vector<48x32xf32>
    %c1 = arith.constant 1 : index
    %c0_12 = arith.constant 0 : index
    %c0_13 = arith.constant 0 : index
    %14 = vector.load %arg6[%c1, %c0_12, %c0_13] : memref<3x32x32xf32, #tpu.memory_space<vmem>>, vector<1x32x32xf32>
    %15 = vector.shape_cast %14 : vector<1x32x32xf32> to vector<32x32xf32>
    %cst_14 = arith.constant dense<0.000000e+00> : vector<48x32xf32>
    %16 = tpu.matmul %10, %15, %cst_14 {dimension_numbers = #tpu.dot_dimension_numbers<[1], [0], [0], [1], [0, 0, 1, 1], [], []>} : vector<48x32xf32>, vector<32x32xf32>, vector<48x32xf32> -> vector<48x32xf32>
    %c2 = arith.constant 2 : index
    %c0_15 = arith.constant 0 : index
    %c0_16 = arith.constant 0 : index
    %17 = vector.load %arg6[%c2, %c0_15, %c0_16] : memref<3x32x32xf32, #tpu.memory_space<vmem>>, vector<1x32x32xf32>
    %18 = vector.shape_cast %17 : vector<1x32x32xf32> to vector<32x32xf32>
    %cst_17 = arith.constant dense<0.000000e+00> : vector<48x32xf32>
    %19 = tpu.matmul %10, %18, %cst_17 {dimension_numbers = #tpu.dot_dimension_numbers<[1], [0], [0], [1], [0, 0, 1, 1], [], []>} : vector<48x32xf32>, vector<32x32xf32>, vector<48x32xf32> -> vector<48x32xf32>
    %c1_i32 = arith.constant 1 : i32
    %20 = tpu.dynamic_rotate %13 by %c1_i32 dim 0 : vector<48x32xf32>, i32 -> vector<48x32xf32>
    %21 = arith.addf %20, %16 : vector<48x32xf32>
    %c47_i32 = arith.constant 47 : i32
    %22 = tpu.dynamic_rotate %19 by %c47_i32 dim 0 : vector<48x32xf32>, i32 -> vector<48x32xf32>
    %23 = arith.addf %21, %22 : vector<48x32xf32>
    %c0_18 = arith.constant 0 : index
    %c0_19 = arith.constant 0 : index
    %24 = vector.load %arg7[%c0_18, %c0_19] : memref<1x32xf32, #tpu.memory_space<vmem>>, vector<1x32xf32>
    %25 = vector.broadcast %24 : vector<1x32xf32> to vector<48x32xf32>
    %26 = arith.addf %23, %25 : vector<48x32xf32>
    %cst_20 = arith.constant 0.000000e+00 : f32
    %27 = vector.broadcast %cst_20 : f32 to vector<48x32xf32>
    %28 = arith.maximumf %26, %27 : vector<48x32xf32>
    %c0_21 = arith.constant 0 : index
    %c0_22 = arith.constant 0 : index
    %29 = vector.load %arg3[%c0_21, %c0_22] : memref<2x48xf32, #tpu.memory_space<vmem>>, vector<2x48xf32>
    %cst_23 = arith.constant dense<0.000000e+00> : vector<2x32xf32>
    %30 = tpu.matmul %29, %28, %cst_23 {dimension_numbers = #tpu.dot_dimension_numbers<[1], [0], [0], [1], [0, 0, 1, 1], [], []>} : vector<2x48xf32>, vector<48x32xf32>, vector<2x32xf32> -> vector<2x32xf32>
    %c0_24 = arith.constant 0 : index
    %c0_25 = arith.constant 0 : index
    %31 = vector.load %arg8[%c0_24, %c0_25] : memref<32x2xf32, #tpu.memory_space<vmem>>, vector<32x2xf32>
    %cst_26 = arith.constant dense<0.000000e+00> : vector<2x2xf32>
    %32 = tpu.matmul %30, %31, %cst_26 {dimension_numbers = #tpu.dot_dimension_numbers<[1], [0], [0], [1], [0, 0, 1, 1], [], []>} : vector<2x32xf32>, vector<32x2xf32>, vector<2x2xf32> -> vector<2x2xf32>
    %c0_27 = arith.constant 0 : index
    %c0_28 = arith.constant 0 : index
    %33 = vector.load %arg9[%c0_27, %c0_28] : memref<1x2xf32, #tpu.memory_space<vmem>>, vector<1x2xf32>
    %34 = vector.broadcast %33 : vector<1x2xf32> to vector<2x2xf32>
    %35 = arith.addf %32, %34 : vector<2x2xf32>
    %c0_29 = arith.constant 0 : index
    %c0_30 = arith.constant 0 : index
    %36 = vector.load %arg10[%c0_29, %c0_30] : memref<2x2xf32, #tpu.memory_space<vmem>>, vector<2x2xf32>
    tpu.vector_store %arg10[%c0_29, %c0_30], %35 {strides = array<i32>} : memref<2x2xf32, #tpu.memory_space<vmem>>, vector<2x2xf32>,
    return
  }
  func.func @transform_0(%arg0: i32) -> (i32, i32) {
    %c0_i32 = arith.constant 0 : i32
    %c0_i32_0 = arith.constant 0 : i32
    return %arg0, %c0_i32 : i32, i32
  }
  func.func @transform_1(%arg0: i32) -> (i32, i32) {
    %c0_i32 = arith.constant 0 : i32
    %c0_i32_0 = arith.constant 0 : i32
    %c0_i32_1 = arith.constant 0 : i32
    return %c0_i32, %c0_i32_0 : i32, i32
  }
  func.func @transform_2(%arg0: i32) -> (i32, i32) {
    %c0_i32 = arith.constant 0 : i32
    %c0_i32_0 = arith.constant 0 : i32
    %c0_i32_1 = arith.constant 0 : i32
    return %c0_i32, %c0_i32_0 : i32, i32
  }
  func.func @transform_3(%arg0: i32) -> (i32, i32) {
    %c0_i32 = arith.constant 0 : i32
    %c0_i32_0 = arith.constant 0 : i32
    %c0_i32_1 = arith.constant 0 : i32
    return %c0_i32, %c0_i32_0 : i32, i32
  }
  func.func @transform_4(%arg0: i32) -> (i32, i32) {
    %c0_i32 = arith.constant 0 : i32
    %c0_i32_0 = arith.constant 0 : i32
    %c0_i32_1 = arith.constant 0 : i32
    return %c0_i32, %c0_i32_0 : i32, i32
  }
  func.func @transform_5(%arg0: i32) -> (i32, i32, i32) {
    %c0_i32 = arith.constant 0 : i32
    %c0_i32_0 = arith.constant 0 : i32
    %c0_i32_1 = arith.constant 0 : i32
    %c0_i32_2 = arith.constant 0 : i32
    return %c0_i32, %c0_i32_0, %c0_i32_1 : i32, i32, i32
  }
  func.func @transform_6(%arg0: i32) -> (i32, i32) {
    %c0_i32 = arith.constant 0 : i32
    %c0_i32_0 = arith.constant 0 : i32
    %c0_i32_1 = arith.constant 0 : i32
    return %c0_i32, %c0_i32_0 : i32, i32
  }
  func.func @transform_7(%arg0: i32) -> (i32, i32) {
    %c0_i32 = arith.constant 0 : i32
    %c0_i32_0 = arith.constant 0 : i32
    %c0_i32_1 = arith.constant 0 : i32
    return %c0_i32, %c0_i32_0 : i32, i32
  }
  func.func @transform_8(%arg0: i32) -> (i32, i32) {
    %c0_i32 = arith.constant 0 : i32
    %c0_i32_0 = arith.constant 0 : i32
    %c0_i32_1 = arith.constant 0 : i32
    return %c0_i32, %c0_i32_0 : i32, i32
  }
  func.func @transform_9(%arg0: i32) -> (i32, i32) {
    %c0_i32 = arith.constant 0 : i32
    %c0_i32_0 = arith.constant 0 : i32
    return %arg0, %c0_i32 : i32, i32
  }
}

</mosaic_0001>

<llo_original>
// kernel: tpu_custom_call.1
$region0: #{tpu_custom_call.1}
  #allocation0 [shape = 'u32[]', space=smem, size = 0x4, offset = 0x4, fixed_abs, tag = 'smem constant byte address 0x4 - core index']
  #allocation1 [shape = 'u32[144,128]{1,0:T(1,128)}', space=vmem, size = 0x12000, scoped, tag = 'internal scratch']
  %s0 = inlined_call_operand.vmem [shape: f32[48,12], index: 0, kind: input, shape index: {}]
  %s1 = inlined_call_operand.vmem [shape: f32[48,1], index: 1, kind: input, shape index: {}]
  %s2 = inlined_call_operand.vmem [shape: f32[2,48], index: 2, kind: input, shape index: {}]
  %s3 = inlined_call_operand.vmem [shape: f32[12,32], index: 3, kind: input, shape index: {}]
  %s4 = inlined_call_operand.vmem [shape: f32[1,32], index: 4, kind: input, shape index: {}]
  %s5 = inlined_call_operand.vmem [shape: f32[3,32,32], index: 5, kind: input, shape index: {}]
  %s6 = inlined_call_operand.vmem [shape: f32[1,32], index: 6, kind: input, shape index: {}]
  %s7 = inlined_call_operand.vmem [shape: f32[32,2], index: 7, kind: input, shape index: {}]
  %s8 = inlined_call_operand.vmem [shape: f32[1,2], index: 8, kind: input, shape index: {}]
  %s9 = inlined_call_operand.hbm [shape: f32[2,2], index: 9, kind: output, shape index: {}]
  %s10 = sld [smem:[#allocation0]]
  $region46: #{tpu_custom_call.1} parent=0
    _
  %s12 = ssub.s32 1, %s10
  %s13 = scalar_select 0, %s12, %s10
  $region1: #{tpu_custom_call.1} parent=0
    #allocation2 [shape = 'u8[1024]{0}', space=vmem, size = 0x400, scoped, tag = 'output window, operand 0, single buffered']
    #allocation3 [shape = 's32[1]{0}', space=sflag, size = 0x4, scoped, tag = 'scoped memory for tpu_custom_call.1']
    %14 = vsyncpa [#allocation3], 0
    // Predicated region
    $region2: #{tpu_custom_call.1} parent=1 // pred_check
      _
    $region3: #{tpu_custom_call.1} parent=1 // pred_check_branch
      %16 = sbr.rel (0) target = $region5
    $region4: #{tpu_custom_call.1} parent=1 // pred_region
      _
    $region5: #{tpu_custom_call.1} parent=1 // pred_fallthru
      _
    // Predicated region
    $region6: #{tpu_custom_call.1} parent=1 // pred_check
      _
    $region7: #{tpu_custom_call.1} parent=1 // pred_check_branch
      %18 = sbr.rel (0) target = $region9
    $region8: #{tpu_custom_call.1} parent=1 // pred_region
      _
    $region9: #{tpu_custom_call.1} parent=1 // pred_fallthru
      _
    // Predicated region
    $region10: #{tpu_custom_call.1} parent=1 // pred_check
      _
    $region11: #{tpu_custom_call.1} parent=1 // pred_check_branch
      %20 = sbr.rel (0) target = $region13
    $region12: #{tpu_custom_call.1} parent=1 // pred_region
      _
    $region13: #{tpu_custom_call.1} parent=1 // pred_fallthru
      _
    // Predicated region
    $region14: #{tpu_custom_call.1} parent=1 // pred_check
      _
    $region15: #{tpu_custom_call.1} parent=1 // pred_check_branch
      %22 = sbr.rel (0) target = $region17
    $region16: #{tpu_custom_call.1} parent=1 // pred_region
      _
    $region17: #{tpu_custom_call.1} parent=1 // pred_fallthru
      _
    // Predicated region
    $region18: #{tpu_custom_call.1} parent=1 // pred_check
      _
    $region19: #{tpu_custom_call.1} parent=1 // pred_check_branch
      %24 = sbr.rel (0) target = $region21
    $region20: #{tpu_custom_call.1} parent=1 // pred_region
      _
    $region21: #{tpu_custom_call.1} parent=1 // pred_fallthru
      _
    // Predicated region
    $region22: #{tpu_custom_call.1} parent=1 // pred_check
      _
    $region23: #{tpu_custom_call.1} parent=1 // pred_check_branch
      %26 = sbr.rel (0) target = $region25
    $region24: #{tpu_custom_call.1} parent=1 // pred_region
      _
    $region25: #{tpu_custom_call.1} parent=1 // pred_fallthru
      _
    // Predicated region
    $region26: #{tpu_custom_call.1} parent=1 // pred_check
      _
    $region27: #{tpu_custom_call.1} parent=1 // pred_check_branch
      %28 = sbr.rel (0) target = $region29
    $region28: #{tpu_custom_call.1} parent=1 // pred_region
      _
    $region29: #{tpu_custom_call.1} parent=1 // pred_fallthru
      _
    // Predicated region
    $region30: #{tpu_custom_call.1} parent=1 // pred_check
      _
    $region31: #{tpu_custom_call.1} parent=1 // pred_check_branch
      %30 = sbr.rel (0) target = $region33
    $region32: #{tpu_custom_call.1} parent=1 // pred_region
      _
    $region33: #{tpu_custom_call.1} parent=1 // pred_fallthru
      _
    // Predicated region
    $region34: #{tpu_custom_call.1} parent=1 // pred_check
      _
    $region35: #{tpu_custom_call.1} parent=1 // pred_check_branch
      %32 = sbr.rel (0) target = $region37
    $region36: #{tpu_custom_call.1} parent=1 // pred_region
      _
    $region37: #{tpu_custom_call.1} parent=1 // pred_fallthru
      _
    %v33 = vld [vmem:[%s0] sm:$0xff]
    %v34 = vld [vmem:[%s0 + $0x8] sm:$0xff]
    %v35 = vld [vmem:[%s0 + $0x10] sm:$0xff]
    %v36 = vld [vmem:[%s0 + $0x18] sm:$0xff]
    %v37 = vld [vmem:[%s0 + $0x20] sm:$0xff]
    %v38 = vld [vmem:[%s0 + $0x28] sm:$0xff]
    %v39 = vld [vmem:[%s3] sm:$0xff]
    %v40 = vld [vmem:[%s3 + $0x8] sm:$0xf]
    %v41 = vld [vmem:[%s4] sm:$0x1]
    %v43 = vlaneseq
    %v44 = vshrl.u32 %v43, 7
    %v45 = vsub.s32 0, %v44
    %v46 = vrot.slane %v41, %v45
    %vm48 = vcmask 97280
    %v50 = vsel %vm48, %v33, 0
    %v53 = vsel %vm48, %v34, 0
    %v56 = vsel %vm48, %v35, 0
    %v59 = vsel %vm48, %v36, 0
    %v62 = vsel %vm48, %v37, 0
    %v65 = vsel %vm48, %v38, 0
    %vm67 = vcmask 1043456
    %v69 = vsel %vm67, %v40, 0
    %71 = vmatprep.subr.mxu0 0.0
    %72 = vmatpush1.msra.mxu0 0.0
    %73 = vmatprep.subr.mxu0 0.0
    %74 = vmatpush1.msra.mxu0 0.0
    %75 = vmatprep.subr.mxu0 0.0
    %76 = vmatpush1.msra.mxu0 0.0
    %77 = vmatprep.subr.mxu0 0.0
    %78 = vmatpush1.msra.mxu0 0.0
    %79 = vmatprep.subr.mxu0 0.0
    %80 = vmatpush1.msra.mxu0 0.0
    %81 = vmatprep.subr.mxu0 0.0
    %82 = vmatpush1.msra.mxu0 0.0
    %83 = vmatprep.subr.mxu0 0.0
    %84 = vmatpush1.msra.mxu0 0.0
    %85 = vmatprep.subr.mxu0 0.0
    %86 = vmatpush1.msra.mxu0 0.0
    %87 = vmatprep.subr.mxu0 0.0
    %88 = vmatpush1.msra.mxu0 0.0
    %89 = vmatprep.subr.mxu0 0.0
    %90 = vmatpush1.msra.mxu0 0.0
    %91 = vmatprep.subr.mxu0 0.0
    %92 = vmatpush1.msra.mxu0 0.0
    %93 = vmatprep.subr.mxu0 0.0
    %94 = vmatpush1.msra.mxu0 0.0
    %95 = vmatprep.subr.mxu0 0.0
    %96 = vmatpush1.msra.mxu0 0.0
    %97 = vmatprep.subr.mxu0 0.0
    %98 = vmatpush1.msra.mxu0 0.0
    %99 = vmatprep.subr.mxu0 0.0
    %100 = vmatpush1.msra.mxu0 %v69
    %101 = vmatprep.subr.mxu0 0.0
    %102 = vmatpush1.msra.mxu0 %v39
    %103 = vmatprep.subr.mxu0 0.0
    %104 = vmatpush2.msra.mxu0 0.0
    %105 = vmatprep.subr.mxu0 0.0
    %106 = vmatpush2.msra.mxu0 0.0
    %107 = vmatprep.subr.mxu0 0.0
    %108 = vmatpush2.msra.mxu0 0.0
    %109 = vmatprep.subr.mxu0 0.0
    %110 = vmatpush2.msra.mxu0 0.0
    %111 = vmatprep.subr.mxu0 0.0
    %112 = vmatpush2.msra.mxu0 0.0
    %113 = vmatprep.subr.mxu0 0.0
    %114 = vmatpush2.msra.mxu0 0.0
    %115 = vmatprep.subr.mxu0 0.0
    %116 = vmatpush2.msra.mxu0 0.0
    %117 = vmatprep.subr.mxu0 0.0
    %118 = vmatpush2.msra.mxu0 0.0
    %119 = vmatprep.subr.mxu0 0.0
    %120 = vmatpush2.msra.mxu0 0.0
    %121 = vmatprep.subr.mxu0 0.0
    %122 = vmatpush2.msra.mxu0 0.0
    %123 = vmatprep.subr.mxu0 0.0
    %124 = vmatpush2.msra.mxu0 0.0
    %125 = vmatprep.subr.mxu0 0.0
    %126 = vmatpush2.msra.mxu0 0.0
    %127 = vmatprep.subr.mxu0 0.0
    %128 = vmatpush2.msra.mxu0 0.0
    %129 = vmatprep.subr.mxu0 0.0
    %130 = vmatpush2.msra.mxu0 0.0
    %131 = vmatprep.subr.mxu0 0.0
    %132 = vmatpush2.msra.mxu0 0.0
    %133 = vmatprep.subr.mxu0 0.0
    %134 = vmatpush2.msra.mxu0 0.0
    %135 = vmatprep.mubr.f32.mxu0 0.0
    %136 = vmatmul.mubr.f32.gmra.mxu0 %v50
    %v137 = vpop.f32.mrf.mxu0
    %v138 = vadd.f32 %v46, %v137
    %v139 = vpop.f32.mrf.mxu0
    %140 = vmatprep.mubr.f32.mxu0 0.0
    %141 = vmatmul.mubr.f32.gmra.mxu0 %v53
    %v142 = vpop.f32.mrf.mxu0
    %v143 = vadd.f32 %v46, %v142
    %v144 = vpop.f32.mrf.mxu0
    %145 = vmatprep.mubr.f32.mxu0 0.0
    %146 = vmatmul.mubr.f32.gmra.mxu0 %v56
    %v147 = vpop.f32.mrf.mxu0
    %v148 = vadd.f32 %v46, %v147
    %v149 = vpop.f32.mrf.mxu0
    %150 = vmatprep.mubr.f32.mxu0 0.0
    %151 = vmatmul.mubr.f32.gmra.mxu0 %v59
    %v152 = vpop.f32.mrf.mxu0
    %v153 = vadd.f32 %v46, %v152
    %v154 = vpop.f32.mrf.mxu0
    %155 = vmatprep.mubr.f32.mxu0 0.0
    %156 = vmatmul.mubr.f32.gmra.mxu0 %v62
    %v157 = vpop.f32.mrf.mxu0
    %v158 = vadd.f32 %v46, %v157
    %v159 = vpop.f32.mrf.mxu0
    %160 = vmatprep.mubr.f32.mxu0 0.0
    %161 = vmatmul.mubr.f32.gmra.mxu0 %v65
    %v162 = vpop.f32.mrf.mxu0
    %v163 = vadd.f32 %v46, %v162
    %v164 = vpop.f32.mrf.mxu0
    %165 = vdwg.mxu0
    %v166 = vmax.f32 %v138, 0.0
    %v167 = vmax.f32 %v143, 0.0
    %v168 = vmax.f32 %v148, 0.0
    %v169 = vmax.f32 %v153, 0.0
    %v170 = vmax.f32 %v158, 0.0
    %v171 = vmax.f32 %v163, 0.0
    %v172 = vld [vmem:[%s1] sm:$0xff]
    %v173 = vld [vmem:[%s1 + $0x8] sm:$0xff]
    %v174 = vld [vmem:[%s1 + $0x10] sm:$0xff]
    %v175 = vld [vmem:[%s1 + $0x18] sm:$0xff]
    %v176 = vld [vmem:[%s1 + $0x20] sm:$0xff]
    %v177 = vld [vmem:[%s1 + $0x28] sm:$0xff]
    %179 = vset.pattern.permute.xlu0 0
    %180 = vperm.xlu0 %179, %v172
    %v181 = vpop.permute.xlu0 %180
    %184 = vset.pattern.permute.xlu0 0
    %185 = vperm.xlu0 %184, %v173
    %v186 = vpop.permute.xlu0 %185
    %189 = vset.pattern.permute.xlu0 0
    %190 = vperm.xlu0 %189, %v174
    %v191 = vpop.permute.xlu0 %190
    %194 = vset.pattern.permute.xlu0 0
    %195 = vperm.xlu0 %194, %v175
    %v196 = vpop.permute.xlu0 %195
    %199 = vset.pattern.permute.xlu0 0
    %200 = vperm.xlu0 %199, %v176
    %v201 = vpop.permute.xlu0 %200
    %204 = vset.pattern.permute.xlu0 0
    %205 = vperm.xlu0 %204, %v177
    %v206 = vpop.permute.xlu0 %205
    %v208 = vmul.f32 %v166, %v181
    %v209 = vmul.f32 %v167, %v186
    %v210 = vmul.f32 %v168, %v191
    %v211 = vmul.f32 %v169, %v196
    %v212 = vmul.f32 %v170, %v201
    %v213 = vmul.f32 %v171, %v206
    %v214 = vld [vmem:[%s5] sm:$0xff]
    %v215 = vld [vmem:[%s5 + $0x8] sm:$0xff]
    %v216 = vld [vmem:[%s5 + $0x10] sm:$0xff]
    %v217 = vld [vmem:[%s5 + $0x18] sm:$0xff]
    %vm218 = vcmask 261120
    %v220 = vsel %vm218, %v208, 0
    %v223 = vsel %vm218, %v209, 0
    %v226 = vsel %vm218, %v210, 0
    %v229 = vsel %vm218, %v211, 0
    %v232 = vsel %vm218, %v212, 0
    %v235 = vsel %vm218, %v213, 0
    %237 = vmatprep.subr.mxu0 0.0
    %238 = vmatpush1.msra.mxu0 0.0
    %239 = vmatprep.subr.mxu0 0.0
    %240 = vmatpush1.msra.mxu0 0.0
    %241 = vmatprep.subr.mxu0 0.0
    %242 = vmatpush1.msra.mxu0 0.0
    %243 = vmatprep.subr.mxu0 0.0
    %244 = vmatpush1.msra.mxu0 0.0
    %245 = vmatprep.subr.mxu0 0.0
    %246 = vmatpush1.msra.mxu0 0.0
    %247 = vmatprep.subr.mxu0 0.0
    %248 = vmatpush1.msra.mxu0 0.0
    %249 = vmatprep.subr.mxu0 0.0
    %250 = vmatpush1.msra.mxu0 0.0
    %251 = vmatprep.subr.mxu0 0.0
    %252 = vmatpush1.msra.mxu0 0.0
    %253 = vmatprep.subr.mxu0 0.0
    %254 = vmatpush1.msra.mxu0 0.0
    %255 = vmatprep.subr.mxu0 0.0
    %256 = vmatpush1.msra.mxu0 0.0
    %257 = vmatprep.subr.mxu0 0.0
    %258 = vmatpush1.msra.mxu0 0.0
    %259 = vmatprep.subr.mxu0 0.0
    %260 = vmatpush1.msra.mxu0 0.0
    %261 = vmatprep.subr.mxu0 0.0
    %262 = vmatpush1.msra.mxu0 %v217
    %263 = vmatprep.subr.mxu0 0.0
    %264 = vmatpush1.msra.mxu0 %v216
    %265 = vmatprep.subr.mxu0 0.0
    %266 = vmatpush1.msra.mxu0 %v215
    %267 = vmatprep.subr.mxu0 0.0
    %268 = vmatpush1.msra.mxu0 %v214
    %269 = vmatprep.subr.mxu0 0.0
    %270 = vmatpush2.msra.mxu0 0.0
    %271 = vmatprep.subr.mxu0 0.0
    %272 = vmatpush2.msra.mxu0 0.0
    %273 = vmatprep.subr.mxu0 0.0
    %274 = vmatpush2.msra.mxu0 0.0
    %275 = vmatprep.subr.mxu0 0.0
    %276 = vmatpush2.msra.mxu0 0.0
    %277 = vmatprep.subr.mxu0 0.0
    %278 = vmatpush2.msra.mxu0 0.0
    %279 = vmatprep.subr.mxu0 0.0
    %280 = vmatpush2.msra.mxu0 0.0
    %281 = vmatprep.subr.mxu0 0.0
    %282 = vmatpush2.msra.mxu0 0.0
    %283 = vmatprep.subr.mxu0 0.0
    %284 = vmatpush2.msra.mxu0 0.0
    %285 = vmatprep.subr.mxu0 0.0
    %286 = vmatpush2.msra.mxu0 0.0
    %287 = vmatprep.subr.mxu0 0.0
    %288 = vmatpush2.msra.mxu0 0.0
    %289 = vmatprep.subr.mxu0 0.0
    %290 = vmatpush2.msra.mxu0 0.0
    %291 = vmatprep.subr.mxu0 0.0
    %292 = vmatpush2.msra.mxu0 0.0
    %293 = vmatprep.subr.mxu0 0.0
    %294 = vmatpush2.msra.mxu0 0.0
    %295 = vmatprep.subr.mxu0 0.0
    %296 = vmatpush2.msra.mxu0 0.0
    %297 = vmatprep.subr.mxu0 0.0
    %298 = vmatpush2.msra.mxu0 0.0
    %299 = vmatprep.subr.mxu0 0.0
    %300 = vmatpush2.msra.mxu0 0.0
    %301 = vmatprep.mubr.f32.mxu0 0.0
    %302 = vmatmul.mubr.f32.gmra.mxu0 %v220
    %v303 = vpop.f32.mrf.mxu0
    %v304 = vadd.f32 0.0, %v303
    %v305 = vpop.f32.mrf.mxu0
    %306 = vmatprep.mubr.f32.mxu0 0.0
    %307 = vmatmul.mubr.f32.gmra.mxu0 %v223
    %v308 = vpop.f32.mrf.mxu0
    %v309 = vadd.f32 0.0, %v308
    %v310 = vpop.f32.mrf.mxu0
    %311 = vmatprep.mubr.f32.mxu0 0.0
    %312 = vmatmul.mubr.f32.gmra.mxu0 %v226
    %v313 = vpop.f32.mrf.mxu0
    %v314 = vadd.f32 0.0, %v313
    %v315 = vpop.f32.mrf.mxu0
    %316 = vmatprep.mubr.f32.mxu0 0.0
    %317 = vmatmul.mubr.f32.gmra.mxu0 %v229
    %v318 = vpop.f32.mrf.mxu0
    %v319 = vadd.f32 0.0, %v318
    %v320 = vpop.f32.mrf.mxu0
    %321 = vmatprep.mubr.f32.mxu0 0.0
    %322 = vmatmul.mubr.f32.gmra.mxu0 %v232
    %v323 = vpop.f32.mrf.mxu0
    %v324 = vadd.f32 0.0, %v323
    %v325 = vpop.f32.mrf.mxu0
    %326 = vmatprep.mubr.f32.mxu0 0.0
    %327 = vmatmul.mubr.f32.gmra.mxu0 %v235
    %v328 = vpop.f32.mrf.mxu0
    %v329 = vadd.f32 0.0, %v328
    %v330 = vpop.f32.mrf.mxu0
    %331 = vdwg.mxu0
    %s332 = scalar_lea.vmem %s5, 32
    %v333 = vld [vmem:[%s332] sm:$0xff]
    %v334 = vld [vmem:[%s332 + $0x8] sm:$0xff]
    %v335 = vld [vmem:[%s332 + $0x10] sm:$0xff]
    %v336 = vld [vmem:[%s332 + $0x18] sm:$0xff]
    %337 = vmatprep.subr.mxu0 0.0
    %338 = vmatpush1.msra.mxu0 0.0
    %339 = vmatprep.subr.mxu0 0.0
    %340 = vmatpush1.msra.mxu0 0.0
    %341 = vmatprep.subr.mxu0 0.0
    %342 = vmatpush1.msra.mxu0 0.0
    %343 = vmatprep.subr.mxu0 0.0
    %344 = vmatpush1.msra.mxu0 0.0
    %345 = vmatprep.subr.mxu0 0.0
    %346 = vmatpush1.msra.mxu0 0.0
    %347 = vmatprep.subr.mxu0 0.0
    %348 = vmatpush1.msra.mxu0 0.0
    %349 = vmatprep.subr.mxu0 0.0
    %350 = vmatpush1.msra.mxu0 0.0
    %351 = vmatprep.subr.mxu0 0.0
    %352 = vmatpush1.msra.mxu0 0.0
    %353 = vmatprep.subr.mxu0 0.0
    %354 = vmatpush1.msra.mxu0 0.0
    %355 = vmatprep.subr.mxu0 0.0
    %356 = vmatpush1.msra.mxu0 0.0
    %357 = vmatprep.subr.mxu0 0.0
    %358 = vmatpush1.msra.mxu0 0.0
    %359 = vmatprep.subr.mxu0 0.0
    %360 = vmatpush1.msra.mxu0 0.0
    %361 = vmatprep.subr.mxu0 0.0
    %362 = vmatpush1.msra.mxu0 %v336
    %363 = vmatprep.subr.mxu0 0.0
    %364 = vmatpush1.msra.mxu0 %v335
    %365 = vmatprep.subr.mxu0 0.0
    %366 = vmatpush1.msra.mxu0 %v334
    %367 = vmatprep.subr.mxu0 0.0
    %368 = vmatpush1.msra.mxu0 %v333
    %369 = vmatprep.subr.mxu0 0.0
    %370 = vmatpush2.msra.mxu0 0.0
    %371 = vmatprep.subr.mxu0 0.0
    %372 = vmatpush2.msra.mxu0 0.0
    %373 = vmatprep.subr.mxu0 0.0
    %374 = vmatpush2.msra.mxu0 0.0
    %375 = vmatprep.subr.mxu0 0.0
    %376 = vmatpush2.msra.mxu0 0.0
    %377 = vmatprep.subr.mxu0 0.0
    %378 = vmatpush2.msra.mxu0 0.0
    %379 = vmatprep.subr.mxu0 0.0
    %380 = vmatpush2.msra.mxu0 0.0
    %381 = vmatprep.subr.mxu0 0.0
    %382 = vmatpush2.msra.mxu0 0.0
    %383 = vmatprep.subr.mxu0 0.0
    %384 = vmatpush2.msra.mxu0 0.0
    %385 = vmatprep.subr.mxu0 0.0
    %386 = vmatpush2.msra.mxu0 0.0
    %387 = vmatprep.subr.mxu0 0.0
    %388 = vmatpush2.msra.mxu0 0.0
    %389 = vmatprep.subr.mxu0 0.0
    %390 = vmatpush2.msra.mxu0 0.0
    %391 = vmatprep.subr.mxu0 0.0
    %392 = vmatpush2.msra.mxu0 0.0
    %393 = vmatprep.subr.mxu0 0.0
    %394 = vmatpush2.msra.mxu0 0.0
    %395 = vmatprep.subr.mxu0 0.0
    %396 = vmatpush2.msra.mxu0 0.0
    %397 = vmatprep.subr.mxu0 0.0
    %398 = vmatpush2.msra.mxu0 0.0
    %399 = vmatprep.subr.mxu0 0.0
    %400 = vmatpush2.msra.mxu0 0.0
    %401 = vmatprep.mubr.f32.mxu0 0.0
    %402 = vmatmul.mubr.f32.gmra.mxu0 %v220
    %v403 = vpop.f32.mrf.mxu0
    %v404 = vadd.f32 0.0, %v403
    %v405 = vpop.f32.mrf.mxu0
    %406 = vmatprep.mubr.f32.mxu0 0.0
    %407 = vmatmul.mubr.f32.gmra.mxu0 %v223
    %v408 = vpop.f32.mrf.mxu0
    %v409 = vadd.f32 0.0, %v408
    %v410 = vpop.f32.mrf.mxu0
    %411 = vmatprep.mubr.f32.mxu0 0.0
    %412 = vmatmul.mubr.f32.gmra.mxu0 %v226
    %v413 = vpop.f32.mrf.mxu0
    %v414 = vadd.f32 0.0, %v413
    %v415 = vpop.f32.mrf.mxu0
    %416 = vmatprep.mubr.f32.mxu0 0.0
    %417 = vmatmul.mubr.f32.gmra.mxu0 %v229
    %v418 = vpop.f32.mrf.mxu0
    %v419 = vadd.f32 0.0, %v418
    %v420 = vpop.f32.mrf.mxu0
    %421 = vmatprep.mubr.f32.mxu0 0.0
    %422 = vmatmul.mubr.f32.gmra.mxu0 %v232
    %v423 = vpop.f32.mrf.mxu0
    %v424 = vadd.f32 0.0, %v423
    %v425 = vpop.f32.mrf.mxu0
    %426 = vmatprep.mubr.f32.mxu0 0.0
    %427 = vmatmul.mubr.f32.gmra.mxu0 %v235
    %v428 = vpop.f32.mrf.mxu0
    %v429 = vadd.f32 0.0, %v428
    %v430 = vpop.f32.mrf.mxu0
    %431 = vdwg.mxu0
    %s432 = scalar_lea.vmem %s5, 64
    %v433 = vld [vmem:[%s432] sm:$0xff]
    %v434 = vld [vmem:[%s432 + $0x8] sm:$0xff]
    %v435 = vld [vmem:[%s432 + $0x10] sm:$0xff]
    %v436 = vld [vmem:[%s432 + $0x18] sm:$0xff]
    %437 = vmatprep.subr.mxu0 0.0
    %438 = vmatpush1.msra.mxu0 0.0
    %439 = vmatprep.subr.mxu0 0.0
    %440 = vmatpush1.msra.mxu0 0.0
    %441 = vmatprep.subr.mxu0 0.0
    %442 = vmatpush1.msra.mxu0 0.0
    %443 = vmatprep.subr.mxu0 0.0
    %444 = vmatpush1.msra.mxu0 0.0
    %445 = vmatprep.subr.mxu0 0.0
    %446 = vmatpush1.msra.mxu0 0.0
    %447 = vmatprep.subr.mxu0 0.0
    %448 = vmatpush1.msra.mxu0 0.0
    %449 = vmatprep.subr.mxu0 0.0
    %450 = vmatpush1.msra.mxu0 0.0
    %451 = vmatprep.subr.mxu0 0.0
    %452 = vmatpush1.msra.mxu0 0.0
    %453 = vmatprep.subr.mxu0 0.0
    %454 = vmatpush1.msra.mxu0 0.0
    %455 = vmatprep.subr.mxu0 0.0
    %456 = vmatpush1.msra.mxu0 0.0
    %457 = vmatprep.subr.mxu0 0.0
    %458 = vmatpush1.msra.mxu0 0.0
    %459 = vmatprep.subr.mxu0 0.0
    %460 = vmatpush1.msra.mxu0 0.0
    %461 = vmatprep.subr.mxu0 0.0
    %462 = vmatpush1.msra.mxu0 %v436
    %463 = vmatprep.subr.mxu0 0.0
    %464 = vmatpush1.msra.mxu0 %v435
    %465 = vmatprep.subr.mxu0 0.0
    %466 = vmatpush1.msra.mxu0 %v434
    %467 = vmatprep.subr.mxu0 0.0
    %468 = vmatpush1.msra.mxu0 %v433
    %469 = vmatprep.subr.mxu0 0.0
    %470 = vmatpush2.msra.mxu0 0.0
    %471 = vmatprep.subr.mxu0 0.0
    %472 = vmatpush2.msra.mxu0 0.0
    %473 = vmatprep.subr.mxu0 0.0
    %474 = vmatpush2.msra.mxu0 0.0
    %475 = vmatprep.subr.mxu0 0.0
    %476 = vmatpush2.msra.mxu0 0.0
    %477 = vmatprep.subr.mxu0 0.0
    %478 = vmatpush2.msra.mxu0 0.0
    %479 = vmatprep.subr.mxu0 0.0
    %480 = vmatpush2.msra.mxu0 0.0
    %481 = vmatprep.subr.mxu0 0.0
    %482 = vmatpush2.msra.mxu0 0.0
    %483 = vmatprep.subr.mxu0 0.0
    %484 = vmatpush2.msra.mxu0 0.0
    %485 = vmatprep.subr.mxu0 0.0
    %486 = vmatpush2.msra.mxu0 0.0
    %487 = vmatprep.subr.mxu0 0.0
    %488 = vmatpush2.msra.mxu0 0.0
    %489 = vmatprep.subr.mxu0 0.0
    %490 = vmatpush2.msra.mxu0 0.0
    %491 = vmatprep.subr.mxu0 0.0
    %492 = vmatpush2.msra.mxu0 0.0
    %493 = vmatprep.subr.mxu0 0.0
    %494 = vmatpush2.msra.mxu0 0.0
    %495 = vmatprep.subr.mxu0 0.0
    %496 = vmatpush2.msra.mxu0 0.0
    %497 = vmatprep.subr.mxu0 0.0
    %498 = vmatpush2.msra.mxu0 0.0
    %499 = vmatprep.subr.mxu0 0.0
    %500 = vmatpush2.msra.mxu0 0.0
    %501 = vmatprep.mubr.f32.mxu0 0.0
    %502 = vmatmul.mubr.f32.gmra.mxu0 %v220
    %v503 = vpop.f32.mrf.mxu0
    %v504 = vadd.f32 0.0, %v503
    %v505 = vpop.f32.mrf.mxu0
    %506 = vmatprep.mubr.f32.mxu0 0.0
    %507 = vmatmul.mubr.f32.gmra.mxu0 %v223
    %v508 = vpop.f32.mrf.mxu0
    %v509 = vadd.f32 0.0, %v508
    %v510 = vpop.f32.mrf.mxu0
    %511 = vmatprep.mubr.f32.mxu0 0.0
    %512 = vmatmul.mubr.f32.gmra.mxu0 %v226
    %v513 = vpop.f32.mrf.mxu0
    %v514 = vadd.f32 0.0, %v513
    %v515 = vpop.f32.mrf.mxu0
    %516 = vmatprep.mubr.f32.mxu0 0.0
    %517 = vmatmul.mubr.f32.gmra.mxu0 %v229
    %v518 = vpop.f32.mrf.mxu0
    %v519 = vadd.f32 0.0, %v518
    %v520 = vpop.f32.mrf.mxu0
    %521 = vmatprep.mubr.f32.mxu0 0.0
    %522 = vmatmul.mubr.f32.gmra.mxu0 %v232
    %v523 = vpop.f32.mrf.mxu0
    %v524 = vadd.f32 0.0, %v523
    %v525 = vpop.f32.mrf.mxu0
    %526 = vmatprep.mubr.f32.mxu0 0.0
    %527 = vmatmul.mubr.f32.gmra.mxu0 %v235
    %v528 = vpop.f32.mrf.mxu0
    %v529 = vadd.f32 0.0, %v528
    %v530 = vpop.f32.mrf.mxu0
    %531 = vdwg.mxu0
    %v532 = vrot.slane %v304, 7
    %v533 = vrot.slane %v309, 7
    %v534 = vrot.slane %v314, 7
    %v535 = vrot.slane %v319, 7
    %v536 = vrot.slane %v324, 7
    %v537 = vrot.slane %v329, 7
    %v538 = vlaneseq
    %v539 = vshrl.u32 %v538, 7
    %vm540 = vcmp.lt.s32.totalorder %v539, 1
    %v541 = vsel %vm540, %v536, %v537
    %v542 = vsel %vm540, %v535, %v536
    %v543 = vsel %vm540, %v534, %v535
    %v544 = vsel %vm540, %v533, %v534
    %v545 = vsel %vm540, %v532, %v533
    %v546 = vsel %vm540, %v537, %v532
    %v547 = vadd.f32 %v546, %v404
    %v548 = vadd.f32 %v545, %v409
    %v549 = vadd.f32 %v544, %v414
    %v550 = vadd.f32 %v543, %v419
    %v551 = vadd.f32 %v542, %v424
    %v552 = vadd.f32 %v541, %v429
    %v553 = vrot.slane %v504, 1
    %v554 = vrot.slane %v509, 1
    %v555 = vrot.slane %v514, 1
    %v556 = vrot.slane %v519, 1
    %v557 = vrot.slane %v524, 1
    %v558 = vrot.slane %v529, 1
    %vm559 = vcmp.lt.s32.totalorder %v539, 7
    %v560 = vsel %vm559, %v557, %v558
    %v561 = vsel %vm559, %v556, %v557
    %v562 = vsel %vm559, %v555, %v556
    %v563 = vsel %vm559, %v554, %v555
    %v564 = vsel %vm559, %v553, %v554
    %v565 = vsel %vm559, %v558, %v553
    %v566 = vadd.f32 %v547, %v564
    %v567 = vadd.f32 %v548, %v563
    %v568 = vadd.f32 %v549, %v562
    %v569 = vadd.f32 %v550, %v561
    %v570 = vadd.f32 %v551, %v560
    %v571 = vadd.f32 %v552, %v565
    %v572 = vld [vmem:[%s6] sm:$0x1]
    %v574 = vlaneseq
    %v575 = vshrl.u32 %v574, 7
    %v576 = vsub.s32 0, %v575
    %v577 = vrot.slane %v572, %v576
    %v579 = vadd.f32 %v566, %v577
    %v580 = vadd.f32 %v567, %v577
    %v581 = vadd.f32 %v568, %v577
    %v582 = vadd.f32 %v569, %v577
    %v583 = vadd.f32 %v570, %v577
    %v584 = vadd.f32 %v571, %v577
    %v585 = vmax.f32 %v579, 0.0
    %v586 = vmax.f32 %v580, 0.0
    %v587 = vmax.f32 %v581, 0.0
    %v588 = vmax.f32 %v582, 0.0
    %v589 = vmax.f32 %v583, 0.0
    %v590 = vmax.f32 %v584, 0.0
    %v591 = vld [vmem:[%s2] sm:$0x3]
    %vm592 = vcmask 392192
    %v594 = vsel %vm592, %v591, 0
    %596 = vmatprep.subr.mxu0 0.0
    %597 = vmatpush1.msra.mxu0 0.0
    %598 = vmatprep.subr.mxu0 0.0
    %599 = vmatpush1.msra.mxu0 0.0
    %600 = vmatprep.subr.mxu0 0.0
    %601 = vmatpush1.msra.mxu0 0.0
    %602 = vmatprep.subr.mxu0 0.0
    %603 = vmatpush1.msra.mxu0 0.0
    %604 = vmatprep.subr.mxu0 0.0
    %605 = vmatpush1.msra.mxu0 0.0
    %606 = vmatprep.subr.mxu0 0.0
    %607 = vmatpush1.msra.mxu0 0.0
    %608 = vmatprep.subr.mxu0 0.0
    %609 = vmatpush1.msra.mxu0 0.0
    %610 = vmatprep.subr.mxu0 0.0
    %611 = vmatpush1.msra.mxu0 0.0
    %612 = vmatprep.subr.mxu0 0.0
    %613 = vmatpush1.msra.mxu0 0.0
    %614 = vmatprep.subr.mxu0 0.0
    %615 = vmatpush1.msra.mxu0 0.0
    %616 = vmatprep.subr.mxu0 0.0
    %617 = vmatpush1.msra.mxu0 %v590
    %618 = vmatprep.subr.mxu0 0.0
    %619 = vmatpush1.msra.mxu0 %v589
    %620 = vmatprep.subr.mxu0 0.0
    %621 = vmatpush1.msra.mxu0 %v588
    %622 = vmatprep.subr.mxu0 0.0
    %623 = vmatpush1.msra.mxu0 %v587
    %624 = vmatprep.subr.mxu0 0.0
    %625 = vmatpush1.msra.mxu0 %v586
    %626 = vmatprep.subr.mxu0 0.0
    %627 = vmatpush1.msra.mxu0 %v585
    %628 = vmatprep.subr.mxu0 0.0
    %629 = vmatpush2.msra.mxu0 0.0
    %630 = vmatprep.subr.mxu0 0.0
    %631 = vmatpush2.msra.mxu0 0.0
    %632 = vmatprep.subr.mxu0 0.0
    %633 = vmatpush2.msra.mxu0 0.0
    %634 = vmatprep.subr.mxu0 0.0
    %635 = vmatpush2.msra.mxu0 0.0
    %636 = vmatprep.subr.mxu0 0.0
    %637 = vmatpush2.msra.mxu0 0.0
    %638 = vmatprep.subr.mxu0 0.0
    %639 = vmatpush2.msra.mxu0 0.0
    %640 = vmatprep.subr.mxu0 0.0
    %641 = vmatpush2.msra.mxu0 0.0
    %642 = vmatprep.subr.mxu0 0.0
    %643 = vmatpush2.msra.mxu0 0.0
    %644 = vmatprep.subr.mxu0 0.0
    %645 = vmatpush2.msra.mxu0 0.0
    %646 = vmatprep.subr.mxu0 0.0
    %647 = vmatpush2.msra.mxu0 0.0
    %648 = vmatprep.subr.mxu0 0.0
    %649 = vmatpush2.msra.mxu0 0.0
    %650 = vmatprep.subr.mxu0 0.0
    %651 = vmatpush2.msra.mxu0 0.0
    %652 = vmatprep.subr.mxu0 0.0
    %653 = vmatpush2.msra.mxu0 0.0
    %654 = vmatprep.subr.mxu0 0.0
    %655 = vmatpush2.msra.mxu0 0.0
    %656 = vmatprep.subr.mxu0 0.0
    %657 = vmatpush2.msra.mxu0 0.0
    %658 = vmatprep.subr.mxu0 0.0
    %659 = vmatpush2.msra.mxu0 0.0
    %660 = vmatprep.mubr.f32.mxu0 0.0
    %661 = vmatmul.mubr.f32.gmra.mxu0 %v594
    %v662 = vpop.f32.mrf.mxu0
    %v663 = vadd.f32 0.0, %v662
    %v664 = vpop.f32.mrf.mxu0
    %665 = vdwg.mxu0
    %v666 = vld [vmem:[%s7] sm:$0xff]
    %v667 = vld [vmem:[%s7 + $0x8] sm:$0xff]
    %v668 = vld [vmem:[%s7 + $0x10] sm:$0xff]
    %v669 = vld [vmem:[%s7 + $0x18] sm:$0xff]
    %v670 = vld [vmem:[%s8] sm:$0x1]
    %v672 = vlaneseq
    %v673 = vshrl.u32 %v672, 7
    %v674 = vsub.s32 0, %v673
    %v675 = vrot.slane %v670, %v674
    %v678 = vsel %vm218, %v663, 0
    %680 = vmatprep.subr.mxu0 0.0
    %681 = vmatpush1.msra.mxu0 0.0
    %682 = vmatprep.subr.mxu0 0.0
    %683 = vmatpush1.msra.mxu0 0.0
    %684 = vmatprep.subr.mxu0 0.0
    %685 = vmatpush1.msra.mxu0 0.0
    %686 = vmatprep.subr.mxu0 0.0
    %687 = vmatpush1.msra.mxu0 0.0
    %688 = vmatprep.subr.mxu0 0.0
    %689 = vmatpush1.msra.mxu0 0.0
    %690 = vmatprep.subr.mxu0 0.0
    %691 = vmatpush1.msra.mxu0 0.0
    %692 = vmatprep.subr.mxu0 0.0
    %693 = vmatpush1.msra.mxu0 0.0
    %694 = vmatprep.subr.mxu0 0.0
    %695 = vmatpush1.msra.mxu0 0.0
    %696 = vmatprep.subr.mxu0 0.0
    %697 = vmatpush1.msra.mxu0 0.0
    %698 = vmatprep.subr.mxu0 0.0
    %699 = vmatpush1.msra.mxu0 0.0
    %700 = vmatprep.subr.mxu0 0.0
    %701 = vmatpush1.msra.mxu0 0.0
    %702 = vmatprep.subr.mxu0 0.0
    %703 = vmatpush1.msra.mxu0 0.0
    %704 = vmatprep.subr.mxu0 0.0
    %705 = vmatpush1.msra.mxu0 %v669
    %706 = vmatprep.subr.mxu0 0.0
    %707 = vmatpush1.msra.mxu0 %v668
    %708 = vmatprep.subr.mxu0 0.0
    %709 = vmatpush1.msra.mxu0 %v667
    %710 = vmatprep.subr.mxu0 0.0
    %711 = vmatpush1.msra.mxu0 %v666
    %712 = vmatprep.subr.mxu0 0.0
    %713 = vmatpush2.msra.mxu0 0.0
    %714 = vmatprep.subr.mxu0 0.0
    %715 = vmatpush2.msra.mxu0 0.0
    %716 = vmatprep.subr.mxu0 0.0
    %717 = vmatpush2.msra.mxu0 0.0
    %718 = vmatprep.subr.mxu0 0.0
    %719 = vmatpush2.msra.mxu0 0.0
    %720 = vmatprep.subr.mxu0 0.0
    %721 = vmatpush2.msra.mxu0 0.0
    %722 = vmatprep.subr.mxu0 0.0
    %723 = vmatpush2.msra.mxu0 0.0
    %724 = vmatprep.subr.mxu0 0.0
    %725 = vmatpush2.msra.mxu0 0.0
    %726 = vmatprep.subr.mxu0 0.0
    %727 = vmatpush2.msra.mxu0 0.0
    %728 = vmatprep.subr.mxu0 0.0
    %729 = vmatpush2.msra.mxu0 0.0
    %730 = vmatprep.subr.mxu0 0.0
    %731 = vmatpush2.msra.mxu0 0.0
    %732 = vmatprep.subr.mxu0 0.0
    %733 = vmatpush2.msra.mxu0 0.0
    %734 = vmatprep.subr.mxu0 0.0
    %735 = vmatpush2.msra.mxu0 0.0
    %736 = vmatprep.subr.mxu0 0.0
    %737 = vmatpush2.msra.mxu0 0.0
    %738 = vmatprep.subr.mxu0 0.0
    %739 = vmatpush2.msra.mxu0 0.0
    %740 = vmatprep.subr.mxu0 0.0
    %741 = vmatpush2.msra.mxu0 0.0
    %742 = vmatprep.subr.mxu0 0.0
    %743 = vmatpush2.msra.mxu0 0.0
    %744 = vmatprep.mubr.f32.mxu0 0.0
    %745 = vmatmul.mubr.f32.gmra.mxu0 %v678
    %v746 = vpop.f32.mrf.mxu0
    %v747 = vadd.f32 %v675, %v746
    %v748 = vpop.f32.mrf.mxu0
    %749 = vdwg.mxu0
    %vm750 = vcmask 9216
    %751 = vst.msk [vmem:[#allocation2] sm:$0x3] %vm750, %v747
    // Predicated region
    $region38: #{tpu_custom_call.1} parent=1 // pred_check
      _
    $region39: #{tpu_custom_call.1} parent=1 // pred_check_branch
      %753 = sbr.rel (0) target = $region41
    $region40: #{tpu_custom_call.1} parent=1 // pred_region
      %s755 = ssub.s32 32, 32
      %756 = vsyncadd [#allocation3], %s755
      %s758 = sshll.u32 [#allocation2], 4
      %s759 = int_to_ptr.vmem [resolvable:$true] %s758
      %761 = dma.vmem_to_hbm [thread:$0]  %s759, 32, %s9, [#allocation3]
    $region41: #{tpu_custom_call.1} parent=1 // pred_fallthru
      _
    // Predicated region
    $region42: #{tpu_custom_call.1} parent=1 // pred_check
      _
    $region43: #{tpu_custom_call.1} parent=1 // pred_check_branch
      %763 = sbr.rel (0) target = $region45
    $region44: #{tpu_custom_call.1} parent=1 // pred_region
      %764 = dma.done [#allocation3], 32
    $region45: #{tpu_custom_call.1} parent=1 // pred_fallthru
      _
    %765 = vsyncpa [#allocation3], 1

</llo_original>
